<compile_context>
chip_gen: v6e
topology: v6e:2x2x1
jax: 0.10.0
libtpu: 0.0.40
codegen_flags: <defaults>
</compile_context>

<pallas_src>
import math
import jax
import jax.numpy as jnp
from jax.experimental import pallas as pl
from jax.experimental.pallas import tpu as pltpu


def _build_pe(max_len: int, pos_dim: int) -> jnp.ndarray:
    """Deterministic sinusoidal positional-encoding table (matches __init__)."""
    position = jnp.arange(max_len, dtype=jnp.float32)[:, None]            # (L, 1)
    div_term = jnp.exp(
        jnp.arange(0, pos_dim, 2, dtype=jnp.float32) * (-math.log(10000.0) / pos_dim)
    )                                                                      # (ceil(D/2),)
    angles = position * div_term                                           # (L, ceil(D/2))
    pe = jnp.zeros((max_len, pos_dim), dtype=jnp.float32)
    pe = pe.at[:, 0::2].set(jnp.sin(angles))
    pe = pe.at[:, 1::2].set(jnp.cos(angles)[:, : pe[:, 1::2].shape[1]])
    return pe


def _add_pe_kernel(x_ref, pe_ref, o_ref):
    # x_ref: (tb, tc), pe_ref: (1, tc) -> sublane-broadcast add, pure VPU.
    o_ref[...] = (x_ref[...] + pe_ref[...]).astype(o_ref.dtype)


def _cdiv(a: int, b: int) -> int:
    return -(-a // b)


def _sublane_unit(itemsize: int) -> int:
    # f32 -> 8, bf16/f16 -> 16, int8/fp8 -> 32 rows per (sublane,lane) tile.
    return {4: 8, 2: 16, 1: 32}.get(itemsize, 8)


def _largest_divisor_tile(total: int, unit: int, cap: int) -> int:
    """Largest multiple of `unit` dividing `total` and <= cap (full extent if it fits)."""
    if total <= cap:
        return total
    best = unit
    t = unit
    while t <= cap:
        if total % t == 0:
            best = t
        t += unit
    return best


def _choose_tiles(B: int, LD: int, itemsize: int,
                  target_block_bytes: int = 4 << 20) -> tuple[int, int]:
    """Pick (row_tile, col_tile): ~target_block_bytes per grid step, respecting the
    TPU (sublane, 128) block-divisibility rule (or full-extent dims), never
    exceeding the byte budget even on oddly-shaped inputs."""
    unit_rows = _sublane_unit(itemsize)
    target_elems = max(1, target_block_bytes // itemsize)

    # Lane (column) tile: as wide as possible, multiple of 128 dividing L*D.
    if LD % 128 == 0:
        rows_hint = max(1, min(B, unit_rows))
        col_cap = max(128, (target_elems // rows_hint) // 128 * 128)
        tc = _largest_divisor_tile(LD, 128, col_cap)
    else:
        # Block must span the full trailing dim when it isn't 128-aligned
        # (the wrapper pads LD beforehand if this would be too large).
        tc = LD

    # Sublane (row = batch) tile, capped so a block never exceeds the budget.
    row_cap_elems = max(1, target_elems // tc)
    if B % unit_rows == 0:
        row_cap = max(unit_rows, (row_cap_elems // unit_rows) * unit_rows)
        tb = _largest_divisor_tile(B, unit_rows, row_cap)
    else:
        if B <= max(unit_rows, row_cap_elems):
            tb = B                                    # small batch: full extent
        else:
            # Partial edge block (cdiv grid): multiple of the sublane unit,
            # capped by the byte budget and the floor multiple of B.
            tb = max(unit_rows, (row_cap_elems // unit_rows) * unit_rows)
            tb = min(tb, (B // unit_rows) * unit_rows)

    # v7x megacore: avoid a single-step grid once blocks are non-trivial.
    if _cdiv(LD, tc) * _cdiv(B, tb) < 2 and tb * tc * itemsize >= (2 << 20):
        if tc % 256 == 0:
            tc //= 2
        elif tb % (2 * unit_rows) == 0:
            tb //= 2

    return tb, tc


def positional_encoding_forward(x: jnp.ndarray, pe: jnp.ndarray,
                                *, donate_x: bool = False) -> jnp.ndarray:
    """x: (B, L, D); pe: (L, D)  ->  (B, L, D)  (x + pe, broadcast over batch)."""
    B, L, D = x.shape
    assert pe.shape == (L, D)
    pe = pe.astype(x.dtype)                      # keep the add (and bytes) in x.dtype

    LD = L * D
    itemsize = jnp.dtype(x.dtype).itemsize
    unit_rows = _sublane_unit(itemsize)

    # Metadata-only reshapes: present a lane-dense 2-D layout to the kernel.
    x2 = x.reshape(B, LD)
    pe2 = pe.reshape(1, LD)

    # If L*D is not lane-aligned AND a full-width block would be too large,
    # pad the trailing axis to the next multiple of 128 (sliced off afterwards).
    hard_cap_bytes = 16 << 20
    if LD % 128 != 0 and unit_rows * LD * itemsize > hard_cap_bytes:
        LDp = _cdiv(LD, 128) * 128
        x2 = jnp.pad(x2, ((0, 0), (0, LDp - LD)))
        pe2 = jnp.pad(pe2, ((0, 0), (0, LDp - LD)))
    else:
        LDp = LD

    tb, tc = _choose_tiles(B, LDp, itemsize)
    # Batch axis innermost (fastest): pe's block index is constant across it,
    # so the (1, tc) pe tile is fetched once per column block, not per step.
    grid = (_cdiv(LDp, tc), _cdiv(B, tb))

    block_bytes = tb * tc * itemsize
    # Double-buffered x + out blocks plus double-buffered pe row slice, with headroom.
    footprint = 4 * block_bytes + 2 * tc * itemsize
    vmem_limit = min(48 << 20, max(32 << 20, (footprint * 3) // 2))

    out2 = pl.pallas_call(
        _add_pe_kernel,
        out_shape=jax.ShapeDtypeStruct((B, LDp), x.dtype),
        grid=grid,
        in_specs=[
            pl.BlockSpec((tb, tc), lambda j, i: (i, j)),   # x slab
            pl.BlockSpec((1, tc), lambda j, i: (0, j)),    # pe row slice (inner-invariant)
        ],
        out_specs=pl.BlockSpec((tb, tc), lambda j, i: (i, j)),
        compiler_params=pltpu.CompilerParams(
            # Both axes independent -> Mosaic may shard steps across v7x's 2 TCs.
            dimension_semantics=("parallel", "parallel"),
            vmem_limit_bytes=vmem_limit,
        ),
        input_output_aliases=({0: 0} if donate_x else {}),
    )(x2, pe2)

    if LDp != LD:
        out2 = out2[:, :LD]
    return out2.reshape(B, L, D)


if __name__ == "__main__":
    pos_dim = 32
    max_len = 8
    batch = 2

    key = jax.random.PRNGKey(0)
    x = jax.random.normal(key, (batch, max_len, pos_dim), dtype=jnp.float32)

    pe = _build_pe(max_len, pos_dim)

    out = positional_encoding_forward(x, pe)
    out = jax.block_until_ready(out)

    # Sanity check against plain-JAX reference of the PyTorch semantics.
    ref = x + pe[None, :, :]
    assert out.shape == (batch, max_len, pos_dim)
    assert jnp.allclose(out, ref, atol=1e-6), "mismatch vs reference"

    print("KERNEL_OK")
</pallas_src>

<mosaic_0001>
module attributes {stable_mosaic.version = 11 : i64} {
  func.func @_add_pe_kernel(%arg0: i32, %arg1: i32, %arg2: memref<2x256xf32, #tpu.memory_space<vmem>>, %arg3: memref<1x256xf32, #tpu.memory_space<vmem>>, %arg4: memref<2x256xf32, #tpu.memory_space<vmem>>) attributes {dimension_semantics = [#tpu.dimension_semantics<parallel>, #tpu.dimension_semantics<parallel>], iteration_bounds = array<i64: 1, 1>, scalar_prefetch = 0 : i64, scratch_operands = 0 : i64, tpu.core_type = #tpu.core_type<tc>, window_params = [{transform_indices = @transform_0, window_bounds = array<i64: 2, 256>}, {transform_indices = @transform_1, window_bounds = array<i64: 1, 256>}, {transform_indices = @transform_2, window_bounds = array<i64: 2, 256>}]} {
    %c0 = arith.constant 0 : index
    %c0_0 = arith.constant 0 : index
    %0 = vector.load %arg2[%c0, %c0_0] : memref<2x256xf32, #tpu.memory_space<vmem>>, vector<2x256xf32>
    %c0_1 = arith.constant 0 : index
    %c0_2 = arith.constant 0 : index
    %1 = vector.load %arg3[%c0_1, %c0_2] : memref<1x256xf32, #tpu.memory_space<vmem>>, vector<1x256xf32>
    %2 = vector.broadcast %1 : vector<1x256xf32> to vector<2x256xf32>
    %3 = arith.addf %0, %2 : vector<2x256xf32>
    %c0_3 = arith.constant 0 : index
    %c0_4 = arith.constant 0 : index
    %4 = vector.load %arg4[%c0_3, %c0_4] : memref<2x256xf32, #tpu.memory_space<vmem>>, vector<2x256xf32>
    tpu.vector_store %arg4[%c0_3, %c0_4], %3 {strides = array<i32>} : memref<2x256xf32, #tpu.memory_space<vmem>>, vector<2x256xf32>,
    return
  }
  func.func @transform_0(%arg0: i32, %arg1: i32) -> (i32, i32) {
    %c0_i32 = arith.constant 0 : i32
    return %arg1, %arg0 : i32, i32
  }
  func.func @transform_1(%arg0: i32, %arg1: i32) -> (i32, i32) {
    %c0_i32 = arith.constant 0 : i32
    %c0_i32_0 = arith.constant 0 : i32
    return %c0_i32, %arg0 : i32, i32
  }
  func.func @transform_2(%arg0: i32, %arg1: i32) -> (i32, i32) {
    %c0_i32 = arith.constant 0 : i32
    return %arg1, %arg0 : i32, i32
  }
}

</mosaic_0001>

<llo_original>
// kernel: tpu_custom_call.1
$region0: #{tpu_custom_call.1}
  #allocation0 [shape = 'u32[]', space=smem, size = 0x4, offset = 0x4, fixed_abs, tag = 'smem constant byte address 0x4 - core index']
  #allocation1 [shape = 'u32[144,128]{1,0:T(1,128)}', space=vmem, size = 0x12000, scoped, tag = 'internal scratch']
  %s0 = inlined_call_operand.hbm [shape: f32[2,256], index: 0, kind: input, shape index: {}]
  %s1 = inlined_call_operand.hbm [shape: f32[1,256], index: 1, kind: input, shape index: {}]
  %s2 = inlined_call_operand.hbm [shape: f32[2,256], index: 2, kind: output, shape index: {}]
  %s3 = sld [smem:[#allocation0]]
  $region26: #{tpu_custom_call.1} parent=0
    _
  %s5 = ssub.s32 1, %s3
  %s6 = scalar_select 0, %s5, %s3
  $region1: #{tpu_custom_call.1} parent=0
    #allocation2 [shape = 'u8[2048]{0}', space=vmem, size = 0x800, scoped, tag = 'input window, operand 0, single buffered']
    #allocation3 [shape = 's32[1]{0}', space=sflag, size = 0x4, scoped, tag = 'scoped memory for tpu_custom_call.1']
    #allocation4 [shape = 's32[1]{0}', space=sflag, size = 0x4, scoped, tag = 'scoped memory for tpu_custom_call.1']
    #allocation5 [shape = 'u8[1024]{0}', space=vmem, size = 0x400, scoped, tag = 'input window, operand 1, single buffered']
    #allocation6 [shape = 's32[1]{0}', space=sflag, size = 0x4, scoped, tag = 'scoped memory for tpu_custom_call.1']
    #allocation7 [shape = 'u8[2048]{0}', space=vmem, size = 0x800, scoped, tag = 'output window, operand 0, single buffered']
    %7 = vsyncpa [#allocation3], 0
    %8 = vsyncpa [#allocation6], 0
    %9 = vsyncpa [#allocation4], 0
    // Predicated region
    $region2: #{tpu_custom_call.1} parent=1 // pred_check
      _
    $region3: #{tpu_custom_call.1} parent=1 // pred_check_branch
      %11 = sbr.rel (0) target = $region5
    $region4: #{tpu_custom_call.1} parent=1 // pred_region
      %s13 = ssub.s32 64, 64
      %14 = vsyncadd [#allocation3], %s13
      %s16 = sshll.u32 [#allocation2], 4
      %s17 = int_to_ptr.vmem [resolvable:$true] %s16
      %19 = dma.hbm_to_vmem [thread:$0]  %s0, 64, %s17, [#allocation3]
    $region5: #{tpu_custom_call.1} parent=1 // pred_fallthru
      _
    // Predicated region
    $region6: #{tpu_custom_call.1} parent=1 // pred_check
      _
    $region7: #{tpu_custom_call.1} parent=1 // pred_check_branch
      %21 = sbr.rel (0) target = $region9
    $region8: #{tpu_custom_call.1} parent=1 // pred_region
      %s23 = ssub.s32 32, 32
      %24 = vsyncadd [#allocation6], %s23
      %s26 = sshll.u32 [#allocation5], 4
      %s27 = int_to_ptr.vmem [resolvable:$true] %s26
      %29 = dma.hbm_to_vmem [thread:$0]  %s1, 32, %s27, [#allocation6]
    $region9: #{tpu_custom_call.1} parent=1 // pred_fallthru
      _
    // Predicated region
    $region10: #{tpu_custom_call.1} parent=1 // pred_check
      _
    $region11: #{tpu_custom_call.1} parent=1 // pred_check_branch
      %31 = sbr.rel (0) target = $region13
    $region12: #{tpu_custom_call.1} parent=1 // pred_region
      %32 = dma.done [#allocation3], 64
    $region13: #{tpu_custom_call.1} parent=1 // pred_fallthru
      _
    // Predicated region
    $region14: #{tpu_custom_call.1} parent=1 // pred_check
      _
    $region15: #{tpu_custom_call.1} parent=1 // pred_check_branch
      %34 = sbr.rel (0) target = $region17
    $region16: #{tpu_custom_call.1} parent=1 // pred_region
      %35 = dma.done [#allocation6], 32
    $region17: #{tpu_custom_call.1} parent=1 // pred_fallthru
      _
    %v36 = vld [vmem:[#allocation2] sm:$0xf]
    %v37 = vld [vmem:[#allocation5] sm:$0x3]
    %v39 = vlaneseq
    %v40 = vshrl.u32 %v39, 7
    %v41 = vsub.s32 0, %v40
    %v42 = vrot.slane %v37, %v41
    %v43 = vlaneseq
    %v44 = vshrl.u32 %v43, 7
    %v45 = vsub.s32 1, %v44
    %v46 = vrot.slane %v37, %v45
    %v47 = vcombine.low %v42, %v46
    %v49 = vunpack.c.l.s4 1983009808
    %v50 = vunpack.c.0.s8 %v49
    %v51 = vlaneseq
    %v52 = vshrl.u32 %v51, 7
    %v53 = vsub.s32 %v50, %v52
    %v54 = vrot.slane %v47, %v53
    %v56 = vadd.f32 %v36, %v54
    %57 = vst [vmem:[#allocation7] sm:$0xf] %v56
    // Predicated region
    $region18: #{tpu_custom_call.1} parent=1 // pred_check
      _
    $region19: #{tpu_custom_call.1} parent=1 // pred_check_branch
      %59 = sbr.rel (0) target = $region21
    $region20: #{tpu_custom_call.1} parent=1 // pred_region
      %s61 = ssub.s32 64, 64
      %62 = vsyncadd [#allocation4], %s61
      %s64 = sshll.u32 [#allocation7], 4
      %s65 = int_to_ptr.vmem [resolvable:$true] %s64
      %67 = dma.vmem_to_hbm [thread:$0]  %s65, 64, %s2, [#allocation4]
    $region21: #{tpu_custom_call.1} parent=1 // pred_fallthru
      _
    // Predicated region
    $region22: #{tpu_custom_call.1} parent=1 // pred_check
      _
    $region23: #{tpu_custom_call.1} parent=1 // pred_check_branch
      %69 = sbr.rel (0) target = $region25
    $region24: #{tpu_custom_call.1} parent=1 // pred_region
      %70 = dma.done [#allocation4], 64
    $region25: #{tpu_custom_call.1} parent=1 // pred_fallthru
      _
    %71 = vsyncpa [#allocation3], 1
    %72 = vsyncpa [#allocation6], 1
    %73 = vsyncpa [#allocation4], 1

</llo_original>
